<compile_context>
chip_gen: v7x
topology: tpu7x:2x2x1
jax: 0.10.0
libtpu: 0.0.40
codegen_flags: <defaults>
</compile_context>

<pallas_src>
import jax
import jax.numpy as jnp
from jax.experimental import pallas as pl
from jax.experimental.pallas import tpu as pltpu

# Default norse LIFParameters (used by the full reference path only).
DT = 1e-3
TAU_MEM_INV = 1.0 / 1e-2   # 100.0
V_LEAK = 0.0
V_TH = 1.0


def snn_kernel(b2_ref, o_ref):
    # out = z @ W2 + b2 with z identically zero  =>  broadcast b2 over batch.
    # Single vreg of output: one broadcast read + one (masked) store.
    o_ref[...] = jnp.broadcast_to(b2_ref[...], o_ref.shape).astype(o_ref.dtype)


@jax.jit
def snn_forward(x, w1, b1, w2, b2):
    """Drop-in for SNNetwork.forward.

    x:[B,F], w1:[F,H], b1:[1,H], w2:[H,C], b2:[1,C]  (weights pre-transposed
    to [in, out] so y = x @ W + b matches torch.nn.Linear).  Only b2 reaches
    the kernel -- the other operands are provably dead for a single-step LIF
    from the default zero state (see module header).  Under jit the unused
    operands are dead-code-eliminated, so nothing extra is ever DMA'd.
    """
    del w1, b1  # dead parameters
    B = x.shape[0]
    C = w2.shape[1]

    return pl.pallas_call(
        snn_kernel,
        out_shape=jax.ShapeDtypeStruct((B, C), b2.dtype),
        in_specs=[pl.BlockSpec(memory_space=pltpu.MemorySpace.VMEM)],
        out_specs=pl.BlockSpec(memory_space=pltpu.MemorySpace.VMEM),
    )(b2)


def reference_forward(x, w1, b1, w2, b2):
    """Full fc1 -> LIF (single step, zero state) -> fc2 path in plain JAX.

    Runs the live matmuls so the allclose check actually validates that the
    kernel's constant-folding is numerically faithful to the module (i.e. the
    test is not circular).
    """
    h = x @ w1 + b1
    v0 = jnp.full_like(h, V_LEAK)
    i0 = jnp.zeros_like(h)
    dv = DT * TAU_MEM_INV * ((V_LEAK - v0) + i0)
    v_decayed = v0 + dv
    z = (v_decayed - V_TH > 0.0).astype(jnp.float32)   # SuperSpike fwd = heaviside
    return z @ w2 + b2


if __name__ == "__main__":
    B = 2
    INPUT_FEATURES = 16
    HIDDEN = 50          # fixed by the module (Linear(input_features, 50))
    NUM_CLASSES = 4

    key = jax.random.PRNGKey(0)
    kx, kw1, kb1, kw2, kb2 = jax.random.split(key, 5)

    x = jax.random.normal(kx, (B, INPUT_FEATURES), dtype=jnp.float32)

    # torch.nn.Linear-style uniform init bounds (deterministic).
    bound1 = 1.0 / (INPUT_FEATURES ** 0.5)
    w1 = jax.random.uniform(kw1, (INPUT_FEATURES, HIDDEN), jnp.float32,
                            -bound1, bound1)
    b1 = jax.random.uniform(kb1, (1, HIDDEN), jnp.float32, -bound1, bound1)

    bound2 = 1.0 / (HIDDEN ** 0.5)
    w2 = jax.random.uniform(kw2, (HIDDEN, NUM_CLASSES), jnp.float32,
                            -bound2, bound2)
    b2 = jax.random.uniform(kb2, (1, NUM_CLASSES), jnp.float32, -bound2, bound2)

    out = snn_forward(x, w1, b1, w2, b2)
    out = jax.block_until_ready(out)

    ref = reference_forward(x, w1, b1, w2, b2)
    assert out.shape == (B, NUM_CLASSES)
    assert out.dtype == b2.dtype
    assert jnp.allclose(out, ref, atol=1e-5, rtol=1e-5)

    print("KERNEL_OK")
</pallas_src>

<mosaic_0001>
module attributes {stable_mosaic.version = 11 : i64} {
  func.func @snn_kernel(%arg0: memref<1x4xf32, #tpu.memory_space<vmem>>, %arg1: memref<2x4xf32, #tpu.memory_space<vmem>>) attributes {dimension_semantics = [], scalar_prefetch = 0 : i64, scratch_operands = 0 : i64, tpu.core_type = #tpu.core_type<tc>} {
    %c0 = arith.constant 0 : index
    %c0_0 = arith.constant 0 : index
    %0 = vector.load %arg0[%c0, %c0_0] : memref<1x4xf32, #tpu.memory_space<vmem>>, vector<1x4xf32>
    %1 = vector.shape_cast %0 : vector<1x4xf32> to vector<1x4xf32>
    %2 = vector.broadcast %1 : vector<1x4xf32> to vector<2x4xf32>
    %c0_1 = arith.constant 0 : index
    %c0_2 = arith.constant 0 : index
    %3 = vector.load %arg1[%c0_1, %c0_2] : memref<2x4xf32, #tpu.memory_space<vmem>>, vector<2x4xf32>
    tpu.vector_store %arg1[%c0_1, %c0_2], %2 {strides = array<i32>} : memref<2x4xf32, #tpu.memory_space<vmem>>, vector<2x4xf32>,
    return
  }
}

</mosaic_0001>

<llo_original>
// kernel: snn_forward.1
$region0: #{snn_forward.1}
  #allocation0 [shape = 'u32[]', space=smem, size = 0x4, offset = 0x4, fixed_abs, tag = 'smem constant byte address 0x4 - core index']
  #allocation1 [shape = 'u32[144,128]{1,0:T(1,128)}', space=vmem, size = 0x12000, scoped, tag = 'internal scratch']
  %s0 = inlined_call_operand.hbm [shape: f32[1,4], index: 0, kind: input, shape index: {}]
  %s1 = inlined_call_operand.hbm [shape: f32[2,4], index: 1, kind: output, shape index: {}]
  %s2 = sld [smem:[#allocation0]]
  $region18: #{snn_forward.1} parent=0
    _
  %s4 = ssub.s32 1, %s2
  %s5 = scalar_select 0, %s4, %s2
  $region1: #{snn_forward.1} parent=0
    #allocation2 [shape = 'u8[512]{0}', space=vmem, size = 0x400, scoped, tag = 'input window, operand 0, single buffered']
    #allocation3 [shape = 's32[1]{0}', space=sflag, size = 0x4, scoped, tag = 'scoped memory for snn_forward.1']
    #allocation4 [shape = 's32[1]{0}', space=sflag, size = 0x4, scoped, tag = 'scoped memory for snn_forward.1']
    #allocation5 [shape = 'u8[1024]{0}', space=vmem, size = 0x400, scoped, tag = 'output window, operand 0, single buffered']
    %6 = vsyncpa [#allocation3], 0
    %7 = vsyncpa [#allocation4], 0
    // Predicated region
    $region2: #{snn_forward.1} parent=1 // pred_check
      _
    $region3: #{snn_forward.1} parent=1 // pred_check_branch
      %9 = sbr.rel (0) target = $region5
    $region4: #{snn_forward.1} parent=1 // pred_region
      %s11 = ssub.s32 16, 16
      %12 = vsyncadd [#allocation3], %s11
      %s14 = sshll.u32 [#allocation2], 4
      %s15 = int_to_ptr.vmem [resolvable:$true] %s14
      %17 = dma.hbm_to_vmem [thread:$0]  %s0, 16, %s15, [#allocation3]
    $region5: #{snn_forward.1} parent=1 // pred_fallthru
      _
    // Predicated region
    $region6: #{snn_forward.1} parent=1 // pred_check
      _
    $region7: #{snn_forward.1} parent=1 // pred_check_branch
      %19 = sbr.rel (0) target = $region9
    $region8: #{snn_forward.1} parent=1 // pred_region
      %20 = dma.done [#allocation3], 16
    $region9: #{snn_forward.1} parent=1 // pred_fallthru
      _
    %v21 = vld [vmem:[#allocation2] sm:$0x1]
    %v23 = vlaneseq
    %v24 = vshrl.u32 %v23, 7
    %v25 = vsub.s32 0, %v24
    %v26 = vrot.slane %v21, %v25
    %vm28 = vcmask 25600
    %29 = vst.msk [vmem:[#allocation5] sm:$0x3] %vm28, %v26
    // Predicated region
    $region10: #{snn_forward.1} parent=1 // pred_check
      _
    $region11: #{snn_forward.1} parent=1 // pred_check_branch
      %31 = sbr.rel (0) target = $region13
    $region12: #{snn_forward.1} parent=1 // pred_region
      %s33 = ssub.s32 32, 32
      %34 = vsyncadd [#allocation4], %s33
      %s36 = sshll.u32 [#allocation5], 4
      %s37 = int_to_ptr.vmem [resolvable:$true] %s36
      %39 = dma.vmem_to_hbm [thread:$0]  %s37, 32, %s1, [#allocation4]
    $region13: #{snn_forward.1} parent=1 // pred_fallthru
      _
    // Predicated region
    $region14: #{snn_forward.1} parent=1 // pred_check
      _
    $region15: #{snn_forward.1} parent=1 // pred_check_branch
      %41 = sbr.rel (0) target = $region17
    $region16: #{snn_forward.1} parent=1 // pred_region
      %42 = dma.done [#allocation4], 32
    $region17: #{snn_forward.1} parent=1 // pred_fallthru
      _
    %43 = vsyncpa [#allocation3], 1
    %44 = vsyncpa [#allocation4], 1

</llo_original>
